<compile_context>
chip_gen: v7x
topology: tpu7x:2x2x1
jax: 0.10.0
libtpu: 0.0.40
codegen_flags: <defaults>
</compile_context>

<pallas_src>
import functools

import jax
import jax.numpy as jnp
from jax.experimental import pallas as pl
from jax.experimental.pallas import tpu as pltpu


def _round_up(x, m):
    return ((x + m - 1) // m) * m


def _patch_embed_kernel(p_ref, w_ref, b_ref, o_ref):
    # One MXU matmul per M-tile; bias add rides the VPU under the matmul.
    acc = jnp.dot(p_ref[...], w_ref[...], preferred_element_type=jnp.float32)
    o_ref[...] = (acc + b_ref[...]).astype(o_ref.dtype)


def _choose_tm(M, Kp, Ep, *, itemsize=4, budget_bytes=20 * 1024 * 1024, cap=2048):
    """Pick an M tile that keeps double-buffered tiles + weight under a VMEM budget."""
    weight_bytes = 2 * Kp * Ep * itemsize          # weight (worst case: double-buffered)
    row_bytes = 2 * (Kp + Ep) * itemsize           # patches tile + out tile, double-buffered
    avail = max(budget_bytes - weight_bytes, 128 * row_bytes)
    tm = (avail // row_bytes) // 128 * 128
    tm = max(128, min(cap, int(tm)))
    tm = min(tm, _round_up(M, 128))                # never bigger than the (padded) problem
    return int(tm)


@functools.partial(jax.jit, static_argnames=("patch_size",))
def patch_embed_forward(x, weight, bias, *, patch_size):
    """x: (B, C, H, W) NCHW. weight: (E, C, ph, pw). bias: (E,).

    Returns (B, num_patches, E)  (flatten=True path of PatchEmbed).
    """
    B, C, H, W = x.shape
    E = weight.shape[0]
    ph = pw = patch_size
    gh, gw = H // ph, W // pw
    num_patches = gh * gw
    K = C * ph * pw
    M = B * num_patches

    # im2col: extract non-overlapping patches, flatten each in (c, kh, kw) order
    # to match the PyTorch OIHW conv weight layout.
    # TODO(synk): fold this reorder into the kernel's DMA (strip-per-grid-step gather)
    # to remove one extra HBM pass over x; kept in XLA here for robust lowering.
    xp = x.reshape(B, C, gh, ph, gw, pw)
    xp = jnp.transpose(xp, (0, 2, 4, 1, 3, 5))          # (B, gh, gw, C, ph, pw)
    patches = xp.reshape(M, K)

    w2d = weight.reshape(E, K).T                        # (K, E)
    b2d = bias.reshape(1, E)

    # 128-align K and E (lane-dense stores, no MXU padding waste); pad M to the tile.
    Kp = _round_up(K, 128)
    Ep = _round_up(E, 128)
    tm = _choose_tm(M, Kp, Ep)
    Mp = _round_up(M, tm)

    if Kp != K or Mp != M:
        patches = jnp.pad(patches, ((0, Mp - M), (0, Kp - K)))
    if Kp != K or Ep != E:
        w2d = jnp.pad(w2d, ((0, Kp - K), (0, Ep - E)))
    if Ep != E:
        b2d = jnp.pad(b2d, ((0, 0), (0, Ep - E)))

    grid = (Mp // tm,)

    cost = pl.CostEstimate(
        flops=2 * Mp * Kp * Ep,
        transcendentals=0,
        bytes_accessed=4 * (Mp * Kp + Kp * Ep + Mp * Ep),
    )

    out = pl.pallas_call(
        _patch_embed_kernel,
        out_shape=jax.ShapeDtypeStruct((Mp, Ep), x.dtype),
        grid=grid,
        in_specs=[
            pl.BlockSpec((tm, Kp), lambda i: (i, 0)),    # patches: tiled over M
            pl.BlockSpec((Kp, Ep), lambda i: (0, 0)),    # weight: constant -> VMEM-resident
            pl.BlockSpec((1, Ep), lambda i: (0, 0)),     # bias: constant, DMA'd once
        ],
        out_specs=pl.BlockSpec((tm, Ep), lambda i: (i, 0)),
        compiler_params=pltpu.CompilerParams(
            dimension_semantics=("parallel",),           # megacore sharding of M axis
            vmem_limit_bytes=48 * 1024 * 1024,           # above v5e's 16 MiB scoped default
        ),
        cost_estimate=cost,
    )(patches, w2d, b2d)

    out = out[:M, :E]
    return out.reshape(B, num_patches, E)


def reference_forward(x, weight, bias, *, patch_size):
    """Pure-JAX reference matching PyTorch Conv2d(stride=kernel) + flatten+transpose."""
    out = jax.lax.conv_general_dilated(
        x, weight,
        window_strides=(patch_size, patch_size),
        padding="VALID",
        dimension_numbers=("NCHW", "OIHW", "NCHW"),
    )
    out = out + bias.reshape(1, -1, 1, 1)
    B, E, gh, gw = out.shape
    return jnp.transpose(out.reshape(B, E, gh * gw), (0, 2, 1))


if __name__ == "__main__":
    # Small shapes consistent with the module: img_size=16, patch_size=4,
    # in_chans=3, embed_dim=32  ->  num_patches = 16, K = 48.
    B, C, IMG, PATCH, EMBED = 2, 3, 16, 4, 32

    key = jax.random.PRNGKey(0)
    kx, kw, kb = jax.random.split(key, 3)
    x = jax.random.normal(kx, (B, C, IMG, IMG), dtype=jnp.float32)
    weight = jax.random.normal(kw, (EMBED, C, PATCH, PATCH), dtype=jnp.float32) * 0.02
    bias = jax.random.normal(kb, (EMBED,), dtype=jnp.float32) * 0.02

    out = patch_embed_forward(x, weight, bias, patch_size=PATCH)
    out = jax.block_until_ready(out)

    ref = jax.block_until_ready(reference_forward(x, weight, bias, patch_size=PATCH))
    assert out.shape == (B, (IMG // PATCH) ** 2, EMBED), out.shape
    assert jnp.allclose(out, ref, atol=1e-4, rtol=1e-4), float(jnp.abs(out - ref).max())

    # TODO(synk): masked_im_modeling / mask_model path (scatter of masked_embed) not
    # implemented since masked_im_modeling=False and mask=None in the default forward.
    print("KERNEL_OK")
</pallas_src>

<mosaic_0001>
module attributes {stable_mosaic.version = 11 : i64} {
  func.func @_patch_embed_kernel(%arg0: i32, %arg1: memref<128x128xf32, #tpu.memory_space<vmem>>, %arg2: memref<128x128xf32, #tpu.memory_space<vmem>>, %arg3: memref<1x128xf32, #tpu.memory_space<vmem>>, %arg4: memref<128x128xf32, #tpu.memory_space<vmem>>) attributes {dimension_semantics = [#tpu.dimension_semantics<parallel>], iteration_bounds = array<i64: 1>, scalar_prefetch = 0 : i64, scratch_operands = 0 : i64, tpu.core_type = #tpu.core_type<tc>, window_params = [{transform_indices = @transform_0, window_bounds = array<i64: 128, 128>}, {pipeline_mode = #tpu.pipeline_mode<synchronous>, transform_indices = @transform_1, window_bounds = array<i64: 128, 128>}, {pipeline_mode = #tpu.pipeline_mode<synchronous>, transform_indices = @transform_2, window_bounds = array<i64: 1, 128>}, {transform_indices = @transform_3, window_bounds = array<i64: 128, 128>}]} {
    %c0 = arith.constant 0 : index
    %c0_0 = arith.constant 0 : index
    %0 = vector.load %arg1[%c0, %c0_0] : memref<128x128xf32, #tpu.memory_space<vmem>>, vector<128x128xf32>
    %c0_1 = arith.constant 0 : index
    %c0_2 = arith.constant 0 : index
    %1 = vector.load %arg2[%c0_1, %c0_2] : memref<128x128xf32, #tpu.memory_space<vmem>>, vector<128x128xf32>
    %cst = arith.constant dense<0.000000e+00> : vector<128x128xf32>
    %2 = tpu.matmul %0, %1, %cst {dimension_numbers = #tpu.dot_dimension_numbers<[1], [0], [0], [1], [0, 0, 1, 1], [], []>} : vector<128x128xf32>, vector<128x128xf32>, vector<128x128xf32> -> vector<128x128xf32>
    %c0_3 = arith.constant 0 : index
    %c0_4 = arith.constant 0 : index
    %3 = vector.load %arg3[%c0_3, %c0_4] : memref<1x128xf32, #tpu.memory_space<vmem>>, vector<1x128xf32>
    %4 = vector.broadcast %3 : vector<1x128xf32> to vector<128x128xf32>
    %5 = arith.addf %2, %4 : vector<128x128xf32>
    %c0_5 = arith.constant 0 : index
    %c0_6 = arith.constant 0 : index
    %6 = vector.load %arg4[%c0_5, %c0_6] : memref<128x128xf32, #tpu.memory_space<vmem>>, vector<128x128xf32>
    tpu.vector_store %arg4[%c0_5, %c0_6], %5 {strides = array<i32>} : memref<128x128xf32, #tpu.memory_space<vmem>>, vector<128x128xf32>,
    return
  }
  func.func @transform_0(%arg0: i32) -> (i32, i32) {
    %c0_i32 = arith.constant 0 : i32
    %c0_i32_0 = arith.constant 0 : i32
    return %arg0, %c0_i32 : i32, i32
  }
  func.func @transform_1(%arg0: i32) -> (i32, i32) {
    %c0_i32 = arith.constant 0 : i32
    %c0_i32_0 = arith.constant 0 : i32
    %c0_i32_1 = arith.constant 0 : i32
    return %c0_i32, %c0_i32_0 : i32, i32
  }
  func.func @transform_2(%arg0: i32) -> (i32, i32) {
    %c0_i32 = arith.constant 0 : i32
    %c0_i32_0 = arith.constant 0 : i32
    %c0_i32_1 = arith.constant 0 : i32
    return %c0_i32, %c0_i32_0 : i32, i32
  }
  func.func @transform_3(%arg0: i32) -> (i32, i32) {
    %c0_i32 = arith.constant 0 : i32
    %c0_i32_0 = arith.constant 0 : i32
    return %arg0, %c0_i32 : i32, i32
  }
}

</mosaic_0001>

<llo_original>
// kernel: patch_embed_forward.1
$region0: #{patch_embed_forward.1}
  #allocation0 [shape = 'u32[]', space=smem, size = 0x4, offset = 0x4, fixed_abs, tag = 'smem constant byte address 0x4 - core index']
  #allocation1 [shape = 'u32[144,128]{1,0:T(1,128)}', space=vmem, size = 0x12000, scoped, tag = 'internal scratch']
  %s0 = inlined_call_operand.vmem [shape: f32[128,128], index: 0, kind: input, shape index: {}]
  %s1 = inlined_call_operand.vmem [shape: f32[128,128], index: 1, kind: input, shape index: {}]
  %s2 = inlined_call_operand.vmem [shape: f32[1,128], index: 2, kind: input, shape index: {}]
  %s3 = inlined_call_operand.vmem [shape: f32[128,128], index: 3, kind: output, shape index: {}]
  %s4 = sld [smem:[#allocation0]]
  $region22: #{patch_embed_forward.1} parent=0
    _
  %s6 = ssub.s32 1, %s4
  %s7 = scalar_select 0, %s6, %s4
  // Predicated region
  $region2: #{patch_embed_forward.1} parent=0 // pred_check
    _
  $region3: #{patch_embed_forward.1} parent=0 // pred_check_branch
    %9 = sbr.rel (0) target = $region5
  $region4: #{patch_embed_forward.1} parent=0 // pred_region
    _
  $region5: #{patch_embed_forward.1} parent=0 // pred_fallthru
    _
  // Predicated region
  $region6: #{patch_embed_forward.1} parent=0 // pred_check
    _
  $region7: #{patch_embed_forward.1} parent=0 // pred_check_branch
    %11 = sbr.rel (0) target = $region9
  $region8: #{patch_embed_forward.1} parent=0 // pred_region
    _
  $region9: #{patch_embed_forward.1} parent=0 // pred_fallthru
    _
  // Predicated region
  $region10: #{patch_embed_forward.1} parent=0 // pred_check
    _
  $region11: #{patch_embed_forward.1} parent=0 // pred_check_branch
    %13 = sbr.rel (0) target = $region13
  $region12: #{patch_embed_forward.1} parent=0 // pred_region
    _
  $region13: #{patch_embed_forward.1} parent=0 // pred_fallthru
    _
  %v14 = vld [vmem:[%s0] sm:$0xff]
  %v15 = vld [vmem:[%s0 + $0x8] sm:$0xff]
  %v16 = vld [vmem:[%s0 + $0x10] sm:$0xff]
  %v17 = vld [vmem:[%s0 + $0x18] sm:$0xff]
  %v18 = vld [vmem:[%s0 + $0x20] sm:$0xff]
  %v19 = vld [vmem:[%s0 + $0x28] sm:$0xff]
  %v20 = vld [vmem:[%s0 + $0x30] sm:$0xff]
  %v21 = vld [vmem:[%s0 + $0x38] sm:$0xff]
  %v22 = vld [vmem:[%s0 + $0x40] sm:$0xff]
  %v23 = vld [vmem:[%s0 + $0x48] sm:$0xff]
  %v24 = vld [vmem:[%s0 + $0x50] sm:$0xff]
  %v25 = vld [vmem:[%s0 + $0x58] sm:$0xff]
  %v26 = vld [vmem:[%s0 + $0x60] sm:$0xff]
  %v27 = vld [vmem:[%s0 + $0x68] sm:$0xff]
  %v28 = vld [vmem:[%s0 + $0x70] sm:$0xff]
  %v29 = vld [vmem:[%s0 + $0x78] sm:$0xff]
  %v30 = vld [vmem:[%s1] sm:$0xff]
  %v31 = vld [vmem:[%s1 + $0x8] sm:$0xff]
  %v32 = vld [vmem:[%s1 + $0x10] sm:$0xff]
  %v33 = vld [vmem:[%s1 + $0x18] sm:$0xff]
  %v34 = vld [vmem:[%s1 + $0x20] sm:$0xff]
  %v35 = vld [vmem:[%s1 + $0x28] sm:$0xff]
  %v36 = vld [vmem:[%s1 + $0x30] sm:$0xff]
  %v37 = vld [vmem:[%s1 + $0x38] sm:$0xff]
  %v38 = vld [vmem:[%s1 + $0x40] sm:$0xff]
  %v39 = vld [vmem:[%s1 + $0x48] sm:$0xff]
  %v40 = vld [vmem:[%s1 + $0x50] sm:$0xff]
  %v41 = vld [vmem:[%s1 + $0x58] sm:$0xff]
  %v42 = vld [vmem:[%s1 + $0x60] sm:$0xff]
  %v43 = vld [vmem:[%s1 + $0x68] sm:$0xff]
  %v44 = vld [vmem:[%s1 + $0x70] sm:$0xff]
  %v45 = vld [vmem:[%s1 + $0x78] sm:$0xff]
  %v46 = vld [vmem:[%s2] sm:$0x1]
  %v48 = vlaneseq
  %v49 = vshrl.u32 %v48, 7
  %v50 = vsub.s32 0, %v49
  %v51 = vrot.slane %v46, %v50
  %53 = vmatprep.subr.mxu0 0.0
  %54 = vmatpush1.msra.mxu0 %v30
  %55 = vmatprep.subr.mxu0 0.0
  %56 = vmatpush1.msra.mxu0 %v31
  %57 = vmatprep.subr.mxu0 0.0
  %58 = vmatpush1.msra.mxu0 %v32
  %59 = vmatprep.subr.mxu0 0.0
  %60 = vmatpush1.msra.mxu0 %v33
  %61 = vmatprep.subr.mxu0 0.0
  %62 = vmatpush1.msra.mxu0 %v34
  %63 = vmatprep.subr.mxu0 0.0
  %64 = vmatpush1.msra.mxu0 %v35
  %65 = vmatprep.subr.mxu0 0.0
  %66 = vmatpush1.msra.mxu0 %v36
  %67 = vmatprep.subr.mxu0 0.0
  %68 = vmatpush1.msra.mxu0 %v37
  %69 = vmatprep.subr.mxu0 0.0
  %70 = vmatpush1.msra.mxu0 %v38
  %71 = vmatprep.subr.mxu0 0.0
  %72 = vmatpush1.msra.mxu0 %v39
  %73 = vmatprep.subr.mxu0 0.0
  %74 = vmatpush1.msra.mxu0 %v40
  %75 = vmatprep.subr.mxu0 0.0
  %76 = vmatpush1.msra.mxu0 %v41
  %77 = vmatprep.subr.mxu0 0.0
  %78 = vmatpush1.msra.mxu0 %v42
  %79 = vmatprep.subr.mxu0 0.0
  %80 = vmatpush1.msra.mxu0 %v43
  %81 = vmatprep.subr.mxu0 0.0
  %82 = vmatpush1.msra.mxu0 %v44
  %83 = vmatprep.subr.mxu0 0.0
  %84 = vmatpush1.msra.mxu0 %v45
  %85 = vmatprep.subr.mxu0 0.0
  %86 = vmatpush1.msra.mxu0 0.0
  %87 = vmatprep.subr.mxu0 0.0
  %88 = vmatpush1.msra.mxu0 0.0
  %89 = vmatprep.subr.mxu0 0.0
  %90 = vmatpush1.msra.mxu0 0.0
  %91 = vmatprep.subr.mxu0 0.0
  %92 = vmatpush1.msra.mxu0 0.0
  %93 = vmatprep.subr.mxu0 0.0
  %94 = vmatpush1.msra.mxu0 0.0
  %95 = vmatprep.subr.mxu0 0.0
  %96 = vmatpush1.msra.mxu0 0.0
  %97 = vmatprep.subr.mxu0 0.0
  %98 = vmatpush1.msra.mxu0 0.0
  %99 = vmatprep.subr.mxu0 0.0
  %100 = vmatpush1.msra.mxu0 0.0
  %101 = vmatprep.subr.mxu0 0.0
  %102 = vmatpush1.msra.mxu0 0.0
  %103 = vmatprep.subr.mxu0 0.0
  %104 = vmatpush1.msra.mxu0 0.0
  %105 = vmatprep.subr.mxu0 0.0
  %106 = vmatpush1.msra.mxu0 0.0
  %107 = vmatprep.subr.mxu0 0.0
  %108 = vmatpush1.msra.mxu0 0.0
  %109 = vmatprep.subr.mxu0 0.0
  %110 = vmatpush1.msra.mxu0 0.0
  %111 = vmatprep.subr.mxu0 0.0
  %112 = vmatpush1.msra.mxu0 0.0
  %113 = vmatprep.subr.mxu0 0.0
  %114 = vmatpush1.msra.mxu0 0.0
  %115 = vmatprep.subr.mxu0 0.0
  %116 = vmatpush1.msra.mxu0 0.0
  %117 = vmatprep.mubr.f32.mxu0 0.0
  %118 = vmatmul.mubr.f32.gmra.mrb[0].mxu0 %v14
  %v119 = vpop.f32.mrb[0].mxu0
  %v120 = vadd.f32 %v51, %v119
  %v121 = vpop.f32.mrb[0].mxu0
  %122 = vmatprep.mubr.f32.mxu0 0.0
  %123 = vmatmul.mubr.f32.gmra.mrb[0].mxu0 %v15
  %v124 = vpop.f32.mrb[0].mxu0
  %v125 = vadd.f32 %v51, %v124
  %v126 = vpop.f32.mrb[0].mxu0
  %127 = vmatprep.mubr.f32.mxu0 0.0
  %128 = vmatmul.mubr.f32.gmra.mrb[0].mxu0 %v16
  %v129 = vpop.f32.mrb[0].mxu0
  %v130 = vadd.f32 %v51, %v129
  %v131 = vpop.f32.mrb[0].mxu0
  %132 = vmatprep.mubr.f32.mxu0 0.0
  %133 = vmatmul.mubr.f32.gmra.mrb[0].mxu0 %v17
  %v134 = vpop.f32.mrb[0].mxu0
  %v135 = vadd.f32 %v51, %v134
  %v136 = vpop.f32.mrb[0].mxu0
  %137 = vmatprep.mubr.f32.mxu0 0.0
  %138 = vmatmul.mubr.f32.gmra.mrb[0].mxu0 %v18
  %v139 = vpop.f32.mrb[0].mxu0
  %v140 = vadd.f32 %v51, %v139
  %v141 = vpop.f32.mrb[0].mxu0
  %142 = vmatprep.mubr.f32.mxu0 0.0
  %143 = vmatmul.mubr.f32.gmra.mrb[0].mxu0 %v19
  %v144 = vpop.f32.mrb[0].mxu0
  %v145 = vadd.f32 %v51, %v144
  %v146 = vpop.f32.mrb[0].mxu0
  %147 = vmatprep.mubr.f32.mxu0 0.0
  %148 = vmatmul.mubr.f32.gmra.mrb[0].mxu0 %v20
  %v149 = vpop.f32.mrb[0].mxu0
  %v150 = vadd.f32 %v51, %v149
  %v151 = vpop.f32.mrb[0].mxu0
  %152 = vmatprep.mubr.f32.mxu0 0.0
  %153 = vmatmul.mubr.f32.gmra.mrb[0].mxu0 %v21
  %v154 = vpop.f32.mrb[0].mxu0
  %v155 = vadd.f32 %v51, %v154
  %v156 = vpop.f32.mrb[0].mxu0
  %157 = vmatprep.mubr.f32.mxu0 0.0
  %158 = vmatmul.mubr.f32.gmra.mrb[0].mxu0 %v22
  %v159 = vpop.f32.mrb[0].mxu0
  %v160 = vadd.f32 %v51, %v159
  %v161 = vpop.f32.mrb[0].mxu0
  %162 = vmatprep.mubr.f32.mxu0 0.0
  %163 = vmatmul.mubr.f32.gmra.mrb[0].mxu0 %v23
  %v164 = vpop.f32.mrb[0].mxu0
  %v165 = vadd.f32 %v51, %v164
  %v166 = vpop.f32.mrb[0].mxu0
  %167 = vmatprep.mubr.f32.mxu0 0.0
  %168 = vmatmul.mubr.f32.gmra.mrb[0].mxu0 %v24
  %v169 = vpop.f32.mrb[0].mxu0
  %v170 = vadd.f32 %v51, %v169
  %v171 = vpop.f32.mrb[0].mxu0
  %172 = vmatprep.mubr.f32.mxu0 0.0
  %173 = vmatmul.mubr.f32.gmra.mrb[0].mxu0 %v25
  %v174 = vpop.f32.mrb[0].mxu0
  %v175 = vadd.f32 %v51, %v174
  %v176 = vpop.f32.mrb[0].mxu0
  %177 = vmatprep.mubr.f32.mxu0 0.0
  %178 = vmatmul.mubr.f32.gmra.mrb[0].mxu0 %v26
  %v179 = vpop.f32.mrb[0].mxu0
  %v180 = vadd.f32 %v51, %v179
  %v181 = vpop.f32.mrb[0].mxu0
  %182 = vmatprep.mubr.f32.mxu0 0.0
  %183 = vmatmul.mubr.f32.gmra.mrb[0].mxu0 %v27
  %v184 = vpop.f32.mrb[0].mxu0
  %v185 = vadd.f32 %v51, %v184
  %v186 = vpop.f32.mrb[0].mxu0
  %187 = vmatprep.mubr.f32.mxu0 0.0
  %188 = vmatmul.mubr.f32.gmra.mrb[0].mxu0 %v28
  %v189 = vpop.f32.mrb[0].mxu0
  %v190 = vadd.f32 %v51, %v189
  %v191 = vpop.f32.mrb[0].mxu0
  %192 = vmatprep.mubr.f32.mxu0 0.0
  %193 = vmatmul.mubr.f32.gmra.mrb[0].mxu0 %v29
  %v194 = vpop.f32.mrb[0].mxu0
  %v195 = vadd.f32 %v51, %v194
  %v196 = vpop.f32.mrb[0].mxu0
  %197 = vdwg.mxu0
  %198 = vst [vmem:[%s3] sm:$0xff] %v120
  %199 = vst [vmem:[%s3 + $0x8] sm:$0xff] %v125
  %200 = vst [vmem:[%s3 + $0x10] sm:$0xff] %v130
  %201 = vst [vmem:[%s3 + $0x18] sm:$0xff] %v135
  %202 = vst [vmem:[%s3 + $0x20] sm:$0xff] %v140
  %203 = vst [vmem:[%s3 + $0x28] sm:$0xff] %v145
  %204 = vst [vmem:[%s3 + $0x30] sm:$0xff] %v150
  %205 = vst [vmem:[%s3 + $0x38] sm:$0xff] %v155
  %206 = vst [vmem:[%s3 + $0x40] sm:$0xff] %v160
  %207 = vst [vmem:[%s3 + $0x48] sm:$0xff] %v165
  %208 = vst [vmem:[%s3 + $0x50] sm:$0xff] %v170
  %209 = vst [vmem:[%s3 + $0x58] sm:$0xff] %v175
  %210 = vst [vmem:[%s3 + $0x60] sm:$0xff] %v180
  %211 = vst [vmem:[%s3 + $0x68] sm:$0xff] %v185
  %212 = vst [vmem:[%s3 + $0x70] sm:$0xff] %v190
  %213 = vst [vmem:[%s3 + $0x78] sm:$0xff] %v195
  // Predicated region
  $region14: #{patch_embed_forward.1} parent=0 // pred_check
    _
  $region15: #{patch_embed_forward.1} parent=0 // pred_check_branch
    %215 = sbr.rel (0) target = $region17
  $region16: #{patch_embed_forward.1} parent=0 // pred_region
    _
  $region17: #{patch_embed_forward.1} parent=0 // pred_fallthru
    _
  // Predicated region
  $region18: #{patch_embed_forward.1} parent=0 // pred_check
    _
  $region19: #{patch_embed_forward.1} parent=0 // pred_check_branch
    %217 = sbr.rel (0) target = $region21
  $region20: #{patch_embed_forward.1} parent=0 // pred_region
    _
  $region21: #{patch_embed_forward.1} parent=0 // pred_fallthru
    _

</llo_original>
